<compile_context>
chip_gen: v6e
topology: v6e:2x2x1
jax: 0.10.0
libtpu: 0.0.40
codegen_flags: <defaults>
</compile_context>

<pallas_src>
import functools

import jax
import jax.numpy as jnp
from jax.experimental import pallas as pl
from jax.experimental.pallas import tpu as pltpu


def _round_up(x, m):
    return ((x + m - 1) // m) * m


def _embed_concat_kernel(idx_ref, table_ref, out_ref, *, n_stars):
    # idx_ref:   (2, TB) int32  row 0 = stars idx, row 1 = postalcode idx
    #            (lane-dense: TB runs along lanes -> ~8 B/row of index DMA)
    # table_ref: (NK, 2*D)      block-diagonal [stars | postal] table, VMEM resident
    # out_ref:   (TB, 2*D)      one contiguous store per grid step
    idx = jnp.transpose(idx_ref[...])           # (TB, 2): tiny lane->sublane relayout (XLU)
    table = table_ref[...]
    tb = idx.shape[0]
    nk = table.shape[0]

    stars_idx = idx[:, 0:1]                     # (TB, 1)
    postal_idx = idx[:, 1:2] + n_stars          # (TB, 1), offset into combined table

    keys = jax.lax.broadcasted_iota(jnp.int32, (tb, nk), 1)
    # Two ones per row (stars slot + shifted postal slot): one matmul against
    # the block-diagonal table yields the already-concatenated output row.
    onehot = ((keys == stars_idx) | (keys == postal_idx)).astype(table.dtype)

    out_ref[...] = jnp.dot(
        onehot, table,
        preferred_element_type=jnp.float32,
        precision=jax.lax.Precision.HIGHEST,    # exact gather of f32 rows on the MXU
    ).astype(out_ref.dtype)


def item_embedding_yelp(item_fea, emb_stars, emb_postal, *, tile_b=2048):
    """Forward pass of ItemEmbeddingYelp as a Pallas TPU kernel.

    item_fea:   [B, >=2] integer features; col 0 -> stars idx, col 1 -> postal idx
    emb_stars:  [num_stars, D]
    emb_postal: [num_postalcode, D]
    returns:    [B, 2*D]
    """
    B = item_fea.shape[0]
    n_stars, D = emb_stars.shape
    n_postal, d2 = emb_postal.shape
    assert d2 == D
    dtype = emb_stars.dtype
    itemsize = jnp.dtype(dtype).itemsize

    # Block-diagonal combined table (built once per call; tables are tiny):
    #   rows [0, n_stars)                 -> [stars_row | 0]
    #   rows [n_stars, n_stars+n_postal)  -> [0 | postal_row]
    # zero-padded to a multiple of 128 keys so the contraction is a single
    # full-lane-width MXU matmul.
    n_keys = _round_up(n_stars + n_postal, 128)
    table = jnp.zeros((n_keys, 2 * D), dtype)
    table = table.at[:n_stars, :D].set(emb_stars)
    table = table.at[n_stars:n_stars + n_postal, D:].set(emb_postal.astype(dtype))

    # Lane-dense index layout: (2, B) int32.
    idx_t = item_fea[:, :2].astype(jnp.int32).T

    # Batch tile: large (amortizes per-step overhead), multiple of 128 (legal
    # lane-dense (2, TB) block), capped so the grid keeps >=2 steps for v7x's
    # two TensorCores.  VMEM stays tiny (idx + out double-buffered + table).
    tile_b = max(128, (tile_b // 128) * 128)
    tile = min(tile_b, _round_up(pl.cdiv(B, 2), 128))

    if tile >= B:
        # Tiny batch: a single grid step over the whole (8-row-aligned) batch.
        tb = _round_up(B, 8)
        if tb != B:
            idx_t = jnp.pad(idx_t, ((0, 0), (0, tb - B)))   # index 0 is valid
        rows = tb
    else:
        # Large batch: no host-side pad / slice; Pallas masks the partial final
        # block so only the first B output rows are written.
        tb = tile
        rows = B
    grid = (pl.cdiv(rows, tb),)

    cost = pl.CostEstimate(
        flops=2 * rows * n_keys * 2 * D,
        transcendentals=0,
        bytes_accessed=(idx_t.size * 4 + table.size * itemsize
                        + rows * 2 * D * itemsize),
    )

    out = pl.pallas_call(
        functools.partial(_embed_concat_kernel, n_stars=n_stars),
        out_shape=jax.ShapeDtypeStruct((rows, 2 * D), dtype),
        grid_spec=pltpu.PrefetchScalarGridSpec(
            num_scalar_prefetch=0,
            grid=grid,
            in_specs=[
                # (2, TB) lane-dense index tile marching along the batch.
                pl.BlockSpec((2, tb), lambda i: (0, i)),
                # Combined table fully resident (constant block -> DMA'd once).
                pl.BlockSpec((n_keys, 2 * D), lambda i: (0, 0)),
            ],
            out_specs=pl.BlockSpec((tb, 2 * D), lambda i: (i, 0)),
        ),
        compiler_params=pltpu.CompilerParams(
            dimension_semantics=("parallel",)),
        cost_estimate=cost,
    )(idx_t, table)

    # TODO(synk): a lane-folded (B//2, 128) output (or fusing this gather into
    # the consumer kernel) would give unmasked full-width stores; kept as
    # [B, 2*D] to match the PyTorch module's contract.
    return out[:B] if rows != B else out


if __name__ == "__main__":
    # Small deterministic config (mirrors config['num_stars'],
    # config['num_postalcode'], config['embedding_dim']).
    num_stars = 16
    num_postalcode = 64
    embedding_dim = 32

    key = jax.random.PRNGKey(0)
    k_w1, k_w2 = jax.random.split(key)

    # torch.nn.Embedding default init is N(0, 1).
    emb_stars = jax.random.normal(k_w1, (num_stars, embedding_dim), jnp.float32)
    emb_postal = jax.random.normal(k_w2, (num_postalcode, embedding_dim), jnp.float32)

    def ref_fn(item_fea):
        return jnp.concatenate(
            [emb_stars[item_fea[:, 0]], emb_postal[item_fea[:, 1]]], axis=1)

    def make_fea(b, seed):
        ks, kp = jax.random.split(jax.random.PRNGKey(seed))
        s = jax.random.randint(ks, (b,), 0, num_stars)
        p = jax.random.randint(kp, (b,), 0, num_postalcode)
        return jnp.stack([s, p], axis=1).astype(jnp.int32)   # [B, 2]

    # Small batch (single-step grid).
    fea8 = make_fea(8, 1)
    out8 = jax.block_until_ready(item_embedding_yelp(fea8, emb_stars, emb_postal))
    assert out8.shape == (8, 2 * embedding_dim), out8.shape
    assert out8.dtype == jnp.float32
    assert jnp.allclose(out8, ref_fn(fea8)), "mismatch vs JAX reference (batch=8)"

    # Batch not a multiple of 8 (tiny-batch alignment path).
    fea13 = make_fea(13, 2)
    out13 = jax.block_until_ready(item_embedding_yelp(fea13, emb_stars, emb_postal))
    assert out13.shape == (13, 2 * embedding_dim), out13.shape
    assert jnp.allclose(out13, ref_fn(fea13)), "mismatch vs JAX reference (batch=13)"

    # Larger batch: multi-step lane-dense grid with a partial final block.
    fea300 = make_fea(300, 3)
    out300 = jax.block_until_ready(item_embedding_yelp(fea300, emb_stars, emb_postal))
    assert out300.shape == (300, 2 * embedding_dim), out300.shape
    assert jnp.allclose(out300, ref_fn(fea300)), "mismatch vs JAX reference (batch=300)"

    print("KERNEL_OK")
</pallas_src>

<mosaic_0001>
module attributes {stable_mosaic.version = 11 : i64} {
  func.func @_embed_concat_kernel(%arg0: i32, %arg1: memref<2x8xi32, #tpu.memory_space<vmem>>, %arg2: memref<128x64xf32, #tpu.memory_space<vmem>>, %arg3: memref<8x64xf32, #tpu.memory_space<vmem>>) attributes {dimension_semantics = [#tpu.dimension_semantics<parallel>], iteration_bounds = array<i64: 1>, scalar_prefetch = 0 : i64, scratch_operands = 0 : i64, tpu.core_type = #tpu.core_type<tc>, window_params = [{transform_indices = @transform_0, window_bounds = array<i64: 2, 8>}, {pipeline_mode = #tpu.pipeline_mode<synchronous>, transform_indices = @transform_1, window_bounds = array<i64: 128, 64>}, {transform_indices = @transform_2, window_bounds = array<i64: 8, 64>}]} {
    %c0 = arith.constant 0 : index
    %c0_0 = arith.constant 0 : index
    %0 = vector.load %arg1[%c0, %c0_0] : memref<2x8xi32, #tpu.memory_space<vmem>>, vector<2x8xi32>
    %1 = tpu.transpose %0, [1, 0] : vector<2x8xi32> -> vector<8x2xi32>
    %c0_1 = arith.constant 0 : index
    %c0_2 = arith.constant 0 : index
    %2 = vector.load %arg2[%c0_1, %c0_2] : memref<128x64xf32, #tpu.memory_space<vmem>>, vector<128x64xf32>
    %3 = vector.extract_strided_slice %1 {offsets = [0, 0], sizes = [8, 1], strides = [1, 1]} : vector<8x2xi32> to vector<8x1xi32>
    %4 = vector.extract_strided_slice %1 {offsets = [0, 1], sizes = [8, 1], strides = [1, 1]} : vector<8x2xi32> to vector<8x1xi32>
    %c16_i32 = arith.constant 16 : i32
    %5 = vector.broadcast %c16_i32 : i32 to vector<8x1xi32>
    %6 = arith.addi %4, %5 : vector<8x1xi32>
    %7 = tpu.iota {dimensions = array<i32: 1>} : vector<8x128xi32>
    %8 = vector.broadcast %3 : vector<8x1xi32> to vector<8x128xi32>
    %9 = arith.cmpi eq, %7, %8 : vector<8x128xi32>
    %10 = vector.broadcast %6 : vector<8x1xi32> to vector<8x128xi32>
    %11 = arith.cmpi eq, %7, %10 : vector<8x128xi32>
    %12 = arith.ori %9, %11 : vector<8x128xi1>
    %13 = arith.extui %12 : vector<8x128xi1> to vector<8x128xi32>
    %14 = arith.sitofp %13 : vector<8x128xi32> to vector<8x128xf32>
    %cst = arith.constant dense<0.000000e+00> : vector<8x64xf32>
    %15 = tpu.matmul %14, %2, %cst {dimension_numbers = #tpu.dot_dimension_numbers<[1], [0], [0], [1], [0, 0, 1, 1], [], []>, precision = #tpu.contract_precision<fp32>} : vector<8x128xf32>, vector<128x64xf32>, vector<8x64xf32> -> vector<8x64xf32>
    %c0_3 = arith.constant 0 : index
    %c0_4 = arith.constant 0 : index
    %16 = vector.load %arg3[%c0_3, %c0_4] : memref<8x64xf32, #tpu.memory_space<vmem>>, vector<8x64xf32>
    tpu.vector_store %arg3[%c0_3, %c0_4], %15 {strides = array<i32>} : memref<8x64xf32, #tpu.memory_space<vmem>>, vector<8x64xf32>,
    return
  }
  func.func @transform_0(%arg0: i32) -> (i32, i32) {
    %c0_i32 = arith.constant 0 : i32
    %c0_i32_0 = arith.constant 0 : i32
    return %c0_i32, %arg0 : i32, i32
  }
  func.func @transform_1(%arg0: i32) -> (i32, i32) {
    %c0_i32 = arith.constant 0 : i32
    %c0_i32_0 = arith.constant 0 : i32
    %c0_i32_1 = arith.constant 0 : i32
    return %c0_i32, %c0_i32_0 : i32, i32
  }
  func.func @transform_2(%arg0: i32) -> (i32, i32) {
    %c0_i32 = arith.constant 0 : i32
    %c0_i32_0 = arith.constant 0 : i32
    return %arg0, %c0_i32 : i32, i32
  }
}

</mosaic_0001>

<llo_original>
// kernel: tpu_custom_call.1
$region0: #{tpu_custom_call.1}
  #allocation0 [shape = 'u32[]', space=smem, size = 0x4, offset = 0x4, fixed_abs, tag = 'smem constant byte address 0x4 - core index']
  #allocation1 [shape = 'u32[144,128]{1,0:T(1,128)}', space=vmem, size = 0x12000, scoped, tag = 'internal scratch']
  %s0 = inlined_call_operand.vmem [shape: s32[2,8], index: 0, kind: input, shape index: {}]
  %s1 = inlined_call_operand.vmem [shape: f32[128,64], index: 1, kind: input, shape index: {}]
  %s2 = inlined_call_operand.hbm [shape: f32[8,64], index: 2, kind: output, shape index: {}]
  %s3 = sld [smem:[#allocation0]]
  $region18: #{tpu_custom_call.1} parent=0
    _
  %s5 = ssub.s32 1, %s3
  %s6 = scalar_select 0, %s5, %s3
  $region1: #{tpu_custom_call.1} parent=0
    #allocation2 [shape = 'u8[4096]{0}', space=vmem, size = 0x1000, scoped, tag = 'output window, operand 0, single buffered']
    #allocation3 [shape = 's32[1]{0}', space=sflag, size = 0x4, scoped, tag = 'scoped memory for tpu_custom_call.1']
    %7 = vsyncpa [#allocation3], 0
    // Predicated region
    $region2: #{tpu_custom_call.1} parent=1 // pred_check
      _
    $region3: #{tpu_custom_call.1} parent=1 // pred_check_branch
      %9 = sbr.rel (0) target = $region5
    $region4: #{tpu_custom_call.1} parent=1 // pred_region
      _
    $region5: #{tpu_custom_call.1} parent=1 // pred_fallthru
      _
    // Predicated region
    $region6: #{tpu_custom_call.1} parent=1 // pred_check
      _
    $region7: #{tpu_custom_call.1} parent=1 // pred_check_branch
      %11 = sbr.rel (0) target = $region9
    $region8: #{tpu_custom_call.1} parent=1 // pred_region
      _
    $region9: #{tpu_custom_call.1} parent=1 // pred_fallthru
      _
    %v12 = vld [vmem:[%s0] sm:$0x3]
    %13 = vxpose.xlu0.b32.start [1/16] %v12, 128
    %14 = vxpose.xlu0.b32.cont [2/16] 0, 128
    %15 = vxpose.xlu0.b32.cont [3/16] 0, 128
    %16 = vxpose.xlu0.b32.cont [4/16] 0, 128
    %17 = vxpose.xlu0.b32.cont [5/16] 0, 128
    %18 = vxpose.xlu0.b32.cont [6/16] 0, 128
    %19 = vxpose.xlu0.b32.cont [7/16] 0, 128
    %20 = vxpose.xlu0.b32.cont [8/16] 0, 128
    %21 = vxpose.xlu0.b32.cont [9/16] 0, 128
    %22 = vxpose.xlu0.b32.cont [10/16] 0, 128
    %23 = vxpose.xlu0.b32.cont [11/16] 0, 128
    %24 = vxpose.xlu0.b32.cont [12/16] 0, 128
    %25 = vxpose.xlu0.b32.cont [13/16] 0, 128
    %26 = vxpose.xlu0.b32.cont [14/16] 0, 128
    %27 = vxpose.xlu0.b32.cont [15/16] 0, 128
    %28 = vxpose.xlu0.b32.end [16/16] 0, 128
    %v29 = vpop.trf.xlu0
    %v30 = vpop.trf.xlu0
    %v31 = vpop.trf.xlu0
    %v32 = vpop.trf.xlu0
    %v33 = vpop.trf.xlu0
    %v34 = vpop.trf.xlu0
    %v35 = vpop.trf.xlu0
    %v36 = vpop.trf.xlu0
    %v37 = vpop.trf.xlu0
    %v38 = vpop.trf.xlu0
    %v39 = vpop.trf.xlu0
    %v40 = vpop.trf.xlu0
    %v41 = vpop.trf.xlu0
    %v42 = vpop.trf.xlu0
    %v43 = vpop.trf.xlu0
    %v44 = vpop.trf.xlu0
    %v45 = vld [vmem:[%s1] sm:$0xff]
    %v46 = vld [vmem:[%s1 + $0x8] sm:$0xff]
    %v47 = vld [vmem:[%s1 + $0x10] sm:$0xff]
    %v48 = vld [vmem:[%s1 + $0x18] sm:$0xff]
    %v49 = vld [vmem:[%s1 + $0x20] sm:$0xff]
    %v50 = vld [vmem:[%s1 + $0x28] sm:$0xff]
    %v51 = vld [vmem:[%s1 + $0x30] sm:$0xff]
    %v52 = vld [vmem:[%s1 + $0x38] sm:$0xff]
    %v53 = vld [vmem:[%s1 + $0x40] sm:$0xff]
    %v54 = vld [vmem:[%s1 + $0x48] sm:$0xff]
    %v55 = vld [vmem:[%s1 + $0x50] sm:$0xff]
    %v56 = vld [vmem:[%s1 + $0x58] sm:$0xff]
    %v57 = vld [vmem:[%s1 + $0x60] sm:$0xff]
    %v58 = vld [vmem:[%s1 + $0x68] sm:$0xff]
    %v59 = vld [vmem:[%s1 + $0x70] sm:$0xff]
    %v60 = vld [vmem:[%s1 + $0x78] sm:$0xff]
    %v61 = vadd.s32 %v29, 16
    %v62 = vlaneseq
    %v63 = vand.u32 %v62, 127
    %64 = vset.pattern.permute.xlu0 0
    %65 = vperm.xlu0 %64, %v29
    %v66 = vpop.permute.xlu0 %65
    %vm67 = vcmp.eq.s32.totalorder %v63, %v66
    %68 = vset.pattern.permute.xlu0 1
    %69 = vperm.xlu0 %68, %v61
    %v70 = vpop.permute.xlu0 %69
    %vm71 = vcmp.eq.s32.totalorder %v63, %v70
    %vm72 = vmor %vm67, %vm71
    %v73 = vsel %vm72, 1, 0
    %v74 = vcvt.s32.f32 %v73
    %75 = vmatprep.subr.mxu0 0.0
    %v76 = vand.u32 %v60, 4294901760
    %77 = vmatpush1.msra.mxu0 %v76
    %78 = vmatprep.subr.mxu0 0.0
    %v79 = vand.u32 %v59, 4294901760
    %80 = vmatpush1.msra.mxu0 %v79
    %81 = vmatprep.subr.mxu0 0.0
    %v82 = vand.u32 %v58, 4294901760
    %83 = vmatpush1.msra.mxu0 %v82
    %84 = vmatprep.subr.mxu0 0.0
    %v85 = vand.u32 %v57, 4294901760
    %86 = vmatpush1.msra.mxu0 %v85
    %87 = vmatprep.subr.mxu0 0.0
    %v88 = vand.u32 %v56, 4294901760
    %89 = vmatpush1.msra.mxu0 %v88
    %90 = vmatprep.subr.mxu0 0.0
    %v91 = vand.u32 %v55, 4294901760
    %92 = vmatpush1.msra.mxu0 %v91
    %93 = vmatprep.subr.mxu0 0.0
    %v94 = vand.u32 %v54, 4294901760
    %95 = vmatpush1.msra.mxu0 %v94
    %96 = vmatprep.subr.mxu0 0.0
    %v97 = vand.u32 %v53, 4294901760
    %98 = vmatpush1.msra.mxu0 %v97
    %99 = vmatprep.subr.mxu0 0.0
    %v100 = vand.u32 %v52, 4294901760
    %101 = vmatpush1.msra.mxu0 %v100
    %102 = vmatprep.subr.mxu0 0.0
    %v103 = vand.u32 %v51, 4294901760
    %104 = vmatpush1.msra.mxu0 %v103
    %105 = vmatprep.subr.mxu0 0.0
    %v106 = vand.u32 %v50, 4294901760
    %107 = vmatpush1.msra.mxu0 %v106
    %108 = vmatprep.subr.mxu0 0.0
    %v109 = vand.u32 %v49, 4294901760
    %110 = vmatpush1.msra.mxu0 %v109
    %111 = vmatprep.subr.mxu0 0.0
    %v112 = vand.u32 %v48, 4294901760
    %113 = vmatpush1.msra.mxu0 %v112
    %114 = vmatprep.subr.mxu0 0.0
    %v115 = vand.u32 %v47, 4294901760
    %116 = vmatpush1.msra.mxu0 %v115
    %117 = vmatprep.subr.mxu0 0.0
    %v118 = vand.u32 %v46, 4294901760
    %119 = vmatpush1.msra.mxu0 %v118
    %120 = vmatprep.subr.mxu0 0.0
    %v121 = vand.u32 %v45, 4294901760
    %122 = vmatpush1.msra.mxu0 %v121
    %123 = vmatprep.subr.mxu0 0.0
    %124 = vmatpush2.msra.mxu0 0.0
    %125 = vmatprep.subr.mxu0 0.0
    %126 = vmatpush2.msra.mxu0 0.0
    %127 = vmatprep.subr.mxu0 0.0
    %128 = vmatpush2.msra.mxu0 0.0
    %129 = vmatprep.subr.mxu0 0.0
    %130 = vmatpush2.msra.mxu0 0.0
    %131 = vmatprep.subr.mxu0 0.0
    %132 = vmatpush2.msra.mxu0 0.0
    %133 = vmatprep.subr.mxu0 0.0
    %134 = vmatpush2.msra.mxu0 0.0
    %135 = vmatprep.subr.mxu0 0.0
    %136 = vmatpush2.msra.mxu0 0.0
    %137 = vmatprep.subr.mxu0 0.0
    %138 = vmatpush2.msra.mxu0 0.0
    %139 = vmatprep.subr.mxu0 0.0
    %140 = vmatpush2.msra.mxu0 0.0
    %141 = vmatprep.subr.mxu0 0.0
    %142 = vmatpush2.msra.mxu0 0.0
    %143 = vmatprep.subr.mxu0 0.0
    %144 = vmatpush2.msra.mxu0 0.0
    %145 = vmatprep.subr.mxu0 0.0
    %146 = vmatpush2.msra.mxu0 0.0
    %147 = vmatprep.subr.mxu0 0.0
    %148 = vmatpush2.msra.mxu0 0.0
    %149 = vmatprep.subr.mxu0 0.0
    %150 = vmatpush2.msra.mxu0 0.0
    %151 = vmatprep.subr.mxu0 0.0
    %152 = vmatpush2.msra.mxu0 0.0
    %153 = vmatprep.subr.mxu0 0.0
    %154 = vmatpush2.msra.mxu0 0.0
    %155 = vmatprep.mubr.f32.mxu0 0.0
    %v156 = vand.u32 %v74, 4294901760
    %v157 = vsub.f32 %v74, %v156
    %v158 = vand.u32 %v157, 4294901760
    %v159 = vsub.f32 %v157, %v158
    %v160 = vand.u32 %v159, 4294901760
    %161 = vmatmul.mubr.f32.gmra.mxu0 %v160
    %v162 = vpop.f32.mrf.mxu0
    %v163 = vadd.f32 0.0, %v162
    %v164 = vpop.f32.mrf.mxu0
    %165 = vdwg.mxu0
    %166 = vmatprep.subr.mxu0 0.0
    %v167 = vand.u32 %v60, 4294901760
    %v168 = vsub.f32 %v60, %v167
    %v169 = vand.u32 %v168, 4294901760
    %v170 = vsub.f32 %v168, %v169
    %v171 = vand.u32 %v170, 4294901760
    %172 = vmatpush1.msra.mxu0 %v171
    %173 = vmatprep.subr.mxu0 0.0
    %v174 = vand.u32 %v59, 4294901760
    %v175 = vsub.f32 %v59, %v174
    %v176 = vand.u32 %v175, 4294901760
    %v177 = vsub.f32 %v175, %v176
    %v178 = vand.u32 %v177, 4294901760
    %179 = vmatpush1.msra.mxu0 %v178
    %180 = vmatprep.subr.mxu0 0.0
    %v181 = vand.u32 %v58, 4294901760
    %v182 = vsub.f32 %v58, %v181
    %v183 = vand.u32 %v182, 4294901760
    %v184 = vsub.f32 %v182, %v183
    %v185 = vand.u32 %v184, 4294901760
    %186 = vmatpush1.msra.mxu0 %v185
    %187 = vmatprep.subr.mxu0 0.0
    %v188 = vand.u32 %v57, 4294901760
    %v189 = vsub.f32 %v57, %v188
    %v190 = vand.u32 %v189, 4294901760
    %v191 = vsub.f32 %v189, %v190
    %v192 = vand.u32 %v191, 4294901760
    %193 = vmatpush1.msra.mxu0 %v192
    %194 = vmatprep.subr.mxu0 0.0
    %v195 = vand.u32 %v56, 4294901760
    %v196 = vsub.f32 %v56, %v195
    %v197 = vand.u32 %v196, 4294901760
    %v198 = vsub.f32 %v196, %v197
    %v199 = vand.u32 %v198, 4294901760
    %200 = vmatpush1.msra.mxu0 %v199
    %201 = vmatprep.subr.mxu0 0.0
    %v202 = vand.u32 %v55, 4294901760
    %v203 = vsub.f32 %v55, %v202
    %v204 = vand.u32 %v203, 4294901760
    %v205 = vsub.f32 %v203, %v204
    %v206 = vand.u32 %v205, 4294901760
    %207 = vmatpush1.msra.mxu0 %v206
    %208 = vmatprep.subr.mxu0 0.0
    %v209 = vand.u32 %v54, 4294901760
    %v210 = vsub.f32 %v54, %v209
    %v211 = vand.u32 %v210, 4294901760
    %v212 = vsub.f32 %v210, %v211
    %v213 = vand.u32 %v212, 4294901760
    %214 = vmatpush1.msra.mxu0 %v213
    %215 = vmatprep.subr.mxu0 0.0
    %v216 = vand.u32 %v53, 4294901760
    %v217 = vsub.f32 %v53, %v216
    %v218 = vand.u32 %v217, 4294901760
    %v219 = vsub.f32 %v217, %v218
    %v220 = vand.u32 %v219, 4294901760
    %221 = vmatpush1.msra.mxu0 %v220
    %222 = vmatprep.subr.mxu0 0.0
    %v223 = vand.u32 %v52, 4294901760
    %v224 = vsub.f32 %v52, %v223
    %v225 = vand.u32 %v224, 4294901760
    %v226 = vsub.f32 %v224, %v225
    %v227 = vand.u32 %v226, 4294901760
    %228 = vmatpush1.msra.mxu0 %v227
    %229 = vmatprep.subr.mxu0 0.0
    %v230 = vand.u32 %v51, 4294901760
    %v231 = vsub.f32 %v51, %v230
    %v232 = vand.u32 %v231, 4294901760
    %v233 = vsub.f32 %v231, %v232
    %v234 = vand.u32 %v233, 4294901760
    %235 = vmatpush1.msra.mxu0 %v234
    %236 = vmatprep.subr.mxu0 0.0
    %v237 = vand.u32 %v50, 4294901760
    %v238 = vsub.f32 %v50, %v237
    %v239 = vand.u32 %v238, 4294901760
    %v240 = vsub.f32 %v238, %v239
    %v241 = vand.u32 %v240, 4294901760
    %242 = vmatpush1.msra.mxu0 %v241
    %243 = vmatprep.subr.mxu0 0.0
    %v244 = vand.u32 %v49, 4294901760
    %v245 = vsub.f32 %v49, %v244
    %v246 = vand.u32 %v245, 4294901760
    %v247 = vsub.f32 %v245, %v246
    %v248 = vand.u32 %v247, 4294901760
    %249 = vmatpush1.msra.mxu0 %v248
    %250 = vmatprep.subr.mxu0 0.0
    %v251 = vand.u32 %v48, 4294901760
    %v252 = vsub.f32 %v48, %v251
    %v253 = vand.u32 %v252, 4294901760
    %v254 = vsub.f32 %v252, %v253
    %v255 = vand.u32 %v254, 4294901760
    %256 = vmatpush1.msra.mxu0 %v255
    %257 = vmatprep.subr.mxu0 0.0
    %v258 = vand.u32 %v47, 4294901760
    %v259 = vsub.f32 %v47, %v258
    %v260 = vand.u32 %v259, 4294901760
    %v261 = vsub.f32 %v259, %v260
    %v262 = vand.u32 %v261, 4294901760
    %263 = vmatpush1.msra.mxu0 %v262
    %264 = vmatprep.subr.mxu0 0.0
    %v265 = vand.u32 %v46, 4294901760
    %v266 = vsub.f32 %v46, %v265
    %v267 = vand.u32 %v266, 4294901760
    %v268 = vsub.f32 %v266, %v267
    %v269 = vand.u32 %v268, 4294901760
    %270 = vmatpush1.msra.mxu0 %v269
    %271 = vmatprep.subr.mxu0 0.0
    %v272 = vand.u32 %v45, 4294901760
    %v273 = vsub.f32 %v45, %v272
    %v274 = vand.u32 %v273, 4294901760
    %v275 = vsub.f32 %v273, %v274
    %v276 = vand.u32 %v275, 4294901760
    %277 = vmatpush1.msra.mxu0 %v276
    %278 = vmatprep.subr.mxu0 0.0
    %279 = vmatpush2.msra.mxu0 0.0
    %280 = vmatprep.subr.mxu0 0.0
    %281 = vmatpush2.msra.mxu0 0.0
    %282 = vmatprep.subr.mxu0 0.0
    %283 = vmatpush2.msra.mxu0 0.0
    %284 = vmatprep.subr.mxu0 0.0
    %285 = vmatpush2.msra.mxu0 0.0
    %286 = vmatprep.subr.mxu0 0.0
    %287 = vmatpush2.msra.mxu0 0.0
    %288 = vmatprep.subr.mxu0 0.0
    %289 = vmatpush2.msra.mxu0 0.0
    %290 = vmatprep.subr.mxu0 0.0
    %291 = vmatpush2.msra.mxu0 0.0
    %292 = vmatprep.subr.mxu0 0.0
    %293 = vmatpush2.msra.mxu0 0.0
    %294 = vmatprep.subr.mxu0 0.0
    %295 = vmatpush2.msra.mxu0 0.0
    %296 = vmatprep.subr.mxu0 0.0
    %297 = vmatpush2.msra.mxu0 0.0
    %298 = vmatprep.subr.mxu0 0.0
    %299 = vmatpush2.msra.mxu0 0.0
    %300 = vmatprep.subr.mxu0 0.0
    %301 = vmatpush2.msra.mxu0 0.0
    %302 = vmatprep.subr.mxu0 0.0
    %303 = vmatpush2.msra.mxu0 0.0
    %304 = vmatprep.subr.mxu0 0.0
    %305 = vmatpush2.msra.mxu0 0.0
    %306 = vmatprep.subr.mxu0 0.0
    %307 = vmatpush2.msra.mxu0 0.0
    %308 = vmatprep.subr.mxu0 0.0
    %309 = vmatpush2.msra.mxu0 0.0
    %310 = vmatprep.mubr.f32.mxu0 0.0
    %v311 = vand.u32 %v74, 4294901760
    %312 = vmatmul.mubr.f32.gmra.mxu0 %v311
    %v313 = vpop.f32.mrf.mxu0
    %v314 = vadd.f32 %v163, %v313
    %v315 = vpop.f32.mrf.mxu0
    %316 = vdwg.mxu0
    %317 = vmatprep.subr.mxu0 0.0
    %v318 = vand.u32 %v60, 4294901760
    %v319 = vsub.f32 %v60, %v318
    %320 = vmatpush1.msra.mxu0 %v319
    %321 = vmatprep.subr.mxu0 0.0
    %v322 = vand.u32 %v59, 4294901760
    %v323 = vsub.f32 %v59, %v322
    %324 = vmatpush1.msra.mxu0 %v323
    %325 = vmatprep.subr.mxu0 0.0
    %v326 = vand.u32 %v58, 4294901760
    %v327 = vsub.f32 %v58, %v326
    %328 = vmatpush1.msra.mxu0 %v327
    %329 = vmatprep.subr.mxu0 0.0
    %v330 = vand.u32 %v57, 4294901760
    %v331 = vsub.f32 %v57, %v330
    %332 = vmatpush1.msra.mxu0 %v331
    %333 = vmatprep.subr.mxu0 0.0
    %v334 = vand.u32 %v56, 4294901760
    %v335 = vsub.f32 %v56, %v334
    %336 = vmatpush1.msra.mxu0 %v335
    %337 = vmatprep.subr.mxu0 0.0
    %v338 = vand.u32 %v55, 4294901760
    %v339 = vsub.f32 %v55, %v338
    %340 = vmatpush1.msra.mxu0 %v339
    %341 = vmatprep.subr.mxu0 0.0
    %v342 = vand.u32 %v54, 4294901760
    %v343 = vsub.f32 %v54, %v342
    %344 = vmatpush1.msra.mxu0 %v343
    %345 = vmatprep.subr.mxu0 0.0
    %v346 = vand.u32 %v53, 4294901760
    %v347 = vsub.f32 %v53, %v346
    %348 = vmatpush1.msra.mxu0 %v347
    %349 = vmatprep.subr.mxu0 0.0
    %v350 = vand.u32 %v52, 4294901760
    %v351 = vsub.f32 %v52, %v350
    %352 = vmatpush1.msra.mxu0 %v351
    %353 = vmatprep.subr.mxu0 0.0
    %v354 = vand.u32 %v51, 4294901760
    %v355 = vsub.f32 %v51, %v354
    %356 = vmatpush1.msra.mxu0 %v355
    %357 = vmatprep.subr.mxu0 0.0
    %v358 = vand.u32 %v50, 4294901760
    %v359 = vsub.f32 %v50, %v358
    %360 = vmatpush1.msra.mxu0 %v359
    %361 = vmatprep.subr.mxu0 0.0
    %v362 = vand.u32 %v49, 4294901760
    %v363 = vsub.f32 %v49, %v362
    %364 = vmatpush1.msra.mxu0 %v363
    %365 = vmatprep.subr.mxu0 0.0
    %v366 = vand.u32 %v48, 4294901760
    %v367 = vsub.f32 %v48, %v366
    %368 = vmatpush1.msra.mxu0 %v367
    %369 = vmatprep.subr.mxu0 0.0
    %v370 = vand.u32 %v47, 4294901760
    %v371 = vsub.f32 %v47, %v370
    %372 = vmatpush1.msra.mxu0 %v371
    %373 = vmatprep.subr.mxu0 0.0
    %v374 = vand.u32 %v46, 4294901760
    %v375 = vsub.f32 %v46, %v374
    %376 = vmatpush1.msra.mxu0 %v375
    %377 = vmatprep.subr.mxu0 0.0
    %v378 = vand.u32 %v45, 4294901760
    %v379 = vsub.f32 %v45, %v378
    %380 = vmatpush1.msra.mxu0 %v379
    %381 = vmatprep.subr.mxu0 0.0
    %382 = vmatpush2.msra.mxu0 0.0
    %383 = vmatprep.subr.mxu0 0.0
    %384 = vmatpush2.msra.mxu0 0.0
    %385 = vmatprep.subr.mxu0 0.0
    %386 = vmatpush2.msra.mxu0 0.0
    %387 = vmatprep.subr.mxu0 0.0
    %388 = vmatpush2.msra.mxu0 0.0
    %389 = vmatprep.subr.mxu0 0.0
    %390 = vmatpush2.msra.mxu0 0.0
    %391 = vmatprep.subr.mxu0 0.0
    %392 = vmatpush2.msra.mxu0 0.0
    %393 = vmatprep.subr.mxu0 0.0
    %394 = vmatpush2.msra.mxu0 0.0
    %395 = vmatprep.subr.mxu0 0.0
    %396 = vmatpush2.msra.mxu0 0.0
    %397 = vmatprep.subr.mxu0 0.0
    %398 = vmatpush2.msra.mxu0 0.0
    %399 = vmatprep.subr.mxu0 0.0
    %400 = vmatpush2.msra.mxu0 0.0
    %401 = vmatprep.subr.mxu0 0.0
    %402 = vmatpush2.msra.mxu0 0.0
    %403 = vmatprep.subr.mxu0 0.0
    %404 = vmatpush2.msra.mxu0 0.0
    %405 = vmatprep.subr.mxu0 0.0
    %406 = vmatpush2.msra.mxu0 0.0
    %407 = vmatprep.subr.mxu0 0.0
    %408 = vmatpush2.msra.mxu0 0.0
    %409 = vmatprep.subr.mxu0 0.0
    %410 = vmatpush2.msra.mxu0 0.0
    %411 = vmatprep.subr.mxu0 0.0
    %412 = vmatpush2.msra.mxu0 0.0
    %413 = vmatprep.mubr.f32.mxu0 0.0
    %v414 = vand.u32 %v74, 4294901760
    %v415 = vsub.f32 %v74, %v414
    %416 = vmatmul.mubr.f32.gmra.mxu0 %v415
    %v417 = vpop.f32.mrf.mxu0
    %v418 = vadd.f32 %v314, %v417
    %v419 = vpop.f32.mrf.mxu0
    %420 = vdwg.mxu0
    %421 = vmatprep.subr.mxu0 0.0
    %v422 = vand.u32 %v60, 4294901760
    %423 = vmatpush1.msra.mxu0 %v422
    %424 = vmatprep.subr.mxu0 0.0
    %v425 = vand.u32 %v59, 4294901760
    %426 = vmatpush1.msra.mxu0 %v425
    %427 = vmatprep.subr.mxu0 0.0
    %v428 = vand.u32 %v58, 4294901760
    %429 = vmatpush1.msra.mxu0 %v428
    %430 = vmatprep.subr.mxu0 0.0
    %v431 = vand.u32 %v57, 4294901760
    %432 = vmatpush1.msra.mxu0 %v431
    %433 = vmatprep.subr.mxu0 0.0
    %v434 = vand.u32 %v56, 4294901760
    %435 = vmatpush1.msra.mxu0 %v434
    %436 = vmatprep.subr.mxu0 0.0
    %v437 = vand.u32 %v55, 4294901760
    %438 = vmatpush1.msra.mxu0 %v437
    %439 = vmatprep.subr.mxu0 0.0
    %v440 = vand.u32 %v54, 4294901760
    %441 = vmatpush1.msra.mxu0 %v440
    %442 = vmatprep.subr.mxu0 0.0
    %v443 = vand.u32 %v53, 4294901760
    %444 = vmatpush1.msra.mxu0 %v443
    %445 = vmatprep.subr.mxu0 0.0
    %v446 = vand.u32 %v52, 4294901760
    %447 = vmatpush1.msra.mxu0 %v446
    %448 = vmatprep.subr.mxu0 0.0
    %v449 = vand.u32 %v51, 4294901760
    %450 = vmatpush1.msra.mxu0 %v449
    %451 = vmatprep.subr.mxu0 0.0
    %v452 = vand.u32 %v50, 4294901760
    %453 = vmatpush1.msra.mxu0 %v452
    %454 = vmatprep.subr.mxu0 0.0
    %v455 = vand.u32 %v49, 4294901760
    %456 = vmatpush1.msra.mxu0 %v455
    %457 = vmatprep.subr.mxu0 0.0
    %v458 = vand.u32 %v48, 4294901760
    %459 = vmatpush1.msra.mxu0 %v458
    %460 = vmatprep.subr.mxu0 0.0
    %v461 = vand.u32 %v47, 4294901760
    %462 = vmatpush1.msra.mxu0 %v461
    %463 = vmatprep.subr.mxu0 0.0
    %v464 = vand.u32 %v46, 4294901760
    %465 = vmatpush1.msra.mxu0 %v464
    %466 = vmatprep.subr.mxu0 0.0
    %v467 = vand.u32 %v45, 4294901760
    %468 = vmatpush1.msra.mxu0 %v467
    %469 = vmatprep.subr.mxu0 0.0
    %470 = vmatpush2.msra.mxu0 0.0
    %471 = vmatprep.subr.mxu0 0.0
    %472 = vmatpush2.msra.mxu0 0.0
    %473 = vmatprep.subr.mxu0 0.0
    %474 = vmatpush2.msra.mxu0 0.0
    %475 = vmatprep.subr.mxu0 0.0
    %476 = vmatpush2.msra.mxu0 0.0
    %477 = vmatprep.subr.mxu0 0.0
    %478 = vmatpush2.msra.mxu0 0.0
    %479 = vmatprep.subr.mxu0 0.0
    %480 = vmatpush2.msra.mxu0 0.0
    %481 = vmatprep.subr.mxu0 0.0
    %482 = vmatpush2.msra.mxu0 0.0
    %483 = vmatprep.subr.mxu0 0.0
    %484 = vmatpush2.msra.mxu0 0.0
    %485 = vmatprep.subr.mxu0 0.0
    %486 = vmatpush2.msra.mxu0 0.0
    %487 = vmatprep.subr.mxu0 0.0
    %488 = vmatpush2.msra.mxu0 0.0
    %489 = vmatprep.subr.mxu0 0.0
    %490 = vmatpush2.msra.mxu0 0.0
    %491 = vmatprep.subr.mxu0 0.0
    %492 = vmatpush2.msra.mxu0 0.0
    %493 = vmatprep.subr.mxu0 0.0
    %494 = vmatpush2.msra.mxu0 0.0
    %495 = vmatprep.subr.mxu0 0.0
    %496 = vmatpush2.msra.mxu0 0.0
    %497 = vmatprep.subr.mxu0 0.0
    %498 = vmatpush2.msra.mxu0 0.0
    %499 = vmatprep.subr.mxu0 0.0
    %500 = vmatpush2.msra.mxu0 0.0
    %501 = vmatprep.mubr.f32.mxu0 0.0
    %v502 = vand.u32 %v74, 4294901760
    %v503 = vsub.f32 %v74, %v502
    %v504 = vand.u32 %v503, 4294901760
    %505 = vmatmul.mubr.f32.gmra.mxu0 %v504
    %v506 = vpop.f32.mrf.mxu0
    %v507 = vadd.f32 %v418, %v506
    %v508 = vpop.f32.mrf.mxu0
    %509 = vdwg.mxu0
    %510 = vmatprep.subr.mxu0 0.0
    %v511 = vand.u32 %v60, 4294901760
    %v512 = vsub.f32 %v60, %v511
    %v513 = vand.u32 %v512, 4294901760
    %514 = vmatpush1.msra.mxu0 %v513
    %515 = vmatprep.subr.mxu0 0.0
    %v516 = vand.u32 %v59, 4294901760
    %v517 = vsub.f32 %v59, %v516
    %v518 = vand.u32 %v517, 4294901760
    %519 = vmatpush1.msra.mxu0 %v518
    %520 = vmatprep.subr.mxu0 0.0
    %v521 = vand.u32 %v58, 4294901760
    %v522 = vsub.f32 %v58, %v521
    %v523 = vand.u32 %v522, 4294901760
    %524 = vmatpush1.msra.mxu0 %v523
    %525 = vmatprep.subr.mxu0 0.0
    %v526 = vand.u32 %v57, 4294901760
    %v527 = vsub.f32 %v57, %v526
    %v528 = vand.u32 %v527, 4294901760
    %529 = vmatpush1.msra.mxu0 %v528
    %530 = vmatprep.subr.mxu0 0.0
    %v531 = vand.u32 %v56, 4294901760
    %v532 = vsub.f32 %v56, %v531
    %v533 = vand.u32 %v532, 4294901760
    %534 = vmatpush1.msra.mxu0 %v533
    %535 = vmatprep.subr.mxu0 0.0
    %v536 = vand.u32 %v55, 4294901760
    %v537 = vsub.f32 %v55, %v536
    %v538 = vand.u32 %v537, 4294901760
    %539 = vmatpush1.msra.mxu0 %v538
    %540 = vmatprep.subr.mxu0 0.0
    %v541 = vand.u32 %v54, 4294901760
    %v542 = vsub.f32 %v54, %v541
    %v543 = vand.u32 %v542, 4294901760
    %544 = vmatpush1.msra.mxu0 %v543
    %545 = vmatprep.subr.mxu0 0.0
    %v546 = vand.u32 %v53, 4294901760
    %v547 = vsub.f32 %v53, %v546
    %v548 = vand.u32 %v547, 4294901760
    %549 = vmatpush1.msra.mxu0 %v548
    %550 = vmatprep.subr.mxu0 0.0
    %v551 = vand.u32 %v52, 4294901760
    %v552 = vsub.f32 %v52, %v551
    %v553 = vand.u32 %v552, 4294901760
    %554 = vmatpush1.msra.mxu0 %v553
    %555 = vmatprep.subr.mxu0 0.0
    %v556 = vand.u32 %v51, 4294901760
    %v557 = vsub.f32 %v51, %v556
    %v558 = vand.u32 %v557, 4294901760
    %559 = vmatpush1.msra.mxu0 %v558
    %560 = vmatprep.subr.mxu0 0.0
    %v561 = vand.u32 %v50, 4294901760
    %v562 = vsub.f32 %v50, %v561
    %v563 = vand.u32 %v562, 4294901760
    %564 = vmatpush1.msra.mxu0 %v563
    %565 = vmatprep.subr.mxu0 0.0
    %v566 = vand.u32 %v49, 4294901760
    %v567 = vsub.f32 %v49, %v566
    %v568 = vand.u32 %v567, 4294901760
    %569 = vmatpush1.msra.mxu0 %v568
    %570 = vmatprep.subr.mxu0 0.0
    %v571 = vand.u32 %v48, 4294901760
    %v572 = vsub.f32 %v48, %v571
    %v573 = vand.u32 %v572, 4294901760
    %574 = vmatpush1.msra.mxu0 %v573
    %575 = vmatprep.subr.mxu0 0.0
    %v576 = vand.u32 %v47, 4294901760
    %v577 = vsub.f32 %v47, %v576
    %v578 = vand.u32 %v577, 4294901760
    %579 = vmatpush1.msra.mxu0 %v578
    %580 = vmatprep.subr.mxu0 0.0
    %v581 = vand.u32 %v46, 4294901760
    %v582 = vsub.f32 %v46, %v581
    %v583 = vand.u32 %v582, 4294901760
    %584 = vmatpush1.msra.mxu0 %v583
    %585 = vmatprep.subr.mxu0 0.0
    %v586 = vand.u32 %v45, 4294901760
    %v587 = vsub.f32 %v45, %v586
    %v588 = vand.u32 %v587, 4294901760
    %589 = vmatpush1.msra.mxu0 %v588
    %590 = vmatprep.subr.mxu0 0.0
    %591 = vmatpush2.msra.mxu0 0.0
    %592 = vmatprep.subr.mxu0 0.0
    %593 = vmatpush2.msra.mxu0 0.0
    %594 = vmatprep.subr.mxu0 0.0
    %595 = vmatpush2.msra.mxu0 0.0
    %596 = vmatprep.subr.mxu0 0.0
    %597 = vmatpush2.msra.mxu0 0.0
    %598 = vmatprep.subr.mxu0 0.0
    %599 = vmatpush2.msra.mxu0 0.0
    %600 = vmatprep.subr.mxu0 0.0
    %601 = vmatpush2.msra.mxu0 0.0
    %602 = vmatprep.subr.mxu0 0.0
    %603 = vmatpush2.msra.mxu0 0.0
    %604 = vmatprep.subr.mxu0 0.0
    %605 = vmatpush2.msra.mxu0 0.0
    %606 = vmatprep.subr.mxu0 0.0
    %607 = vmatpush2.msra.mxu0 0.0
    %608 = vmatprep.subr.mxu0 0.0
    %609 = vmatpush2.msra.mxu0 0.0
    %610 = vmatprep.subr.mxu0 0.0
    %611 = vmatpush2.msra.mxu0 0.0
    %612 = vmatprep.subr.mxu0 0.0
    %613 = vmatpush2.msra.mxu0 0.0
    %614 = vmatprep.subr.mxu0 0.0
    %615 = vmatpush2.msra.mxu0 0.0
    %616 = vmatprep.subr.mxu0 0.0
    %617 = vmatpush2.msra.mxu0 0.0
    %618 = vmatprep.subr.mxu0 0.0
    %619 = vmatpush2.msra.mxu0 0.0
    %620 = vmatprep.subr.mxu0 0.0
    %621 = vmatpush2.msra.mxu0 0.0
    %622 = vmatprep.mubr.f32.mxu0 0.0
    %v623 = vand.u32 %v74, 4294901760
    %624 = vmatmul.mubr.f32.gmra.mxu0 %v623
    %v625 = vpop.f32.mrf.mxu0
    %v626 = vadd.f32 %v507, %v625
    %v627 = vpop.f32.mrf.mxu0
    %628 = vdwg.mxu0
    %629 = vmatprep.subr.mxu0 0.0
    %v630 = vand.u32 %v60, 4294901760
    %631 = vmatpush1.msra.mxu0 %v630
    %632 = vmatprep.subr.mxu0 0.0
    %v633 = vand.u32 %v59, 4294901760
    %634 = vmatpush1.msra.mxu0 %v633
    %635 = vmatprep.subr.mxu0 0.0
    %v636 = vand.u32 %v58, 4294901760
    %637 = vmatpush1.msra.mxu0 %v636
    %638 = vmatprep.subr.mxu0 0.0
    %v639 = vand.u32 %v57, 4294901760
    %640 = vmatpush1.msra.mxu0 %v639
    %641 = vmatprep.subr.mxu0 0.0
    %v642 = vand.u32 %v56, 4294901760
    %643 = vmatpush1.msra.mxu0 %v642
    %644 = vmatprep.subr.mxu0 0.0
    %v645 = vand.u32 %v55, 4294901760
    %646 = vmatpush1.msra.mxu0 %v645
    %647 = vmatprep.subr.mxu0 0.0
    %v648 = vand.u32 %v54, 4294901760
    %649 = vmatpush1.msra.mxu0 %v648
    %650 = vmatprep.subr.mxu0 0.0
    %v651 = vand.u32 %v53, 4294901760
    %652 = vmatpush1.msra.mxu0 %v651
    %653 = vmatprep.subr.mxu0 0.0
    %v654 = vand.u32 %v52, 4294901760
    %655 = vmatpush1.msra.mxu0 %v654
    %656 = vmatprep.subr.mxu0 0.0
    %v657 = vand.u32 %v51, 4294901760
    %658 = vmatpush1.msra.mxu0 %v657
    %659 = vmatprep.subr.mxu0 0.0
    %v660 = vand.u32 %v50, 4294901760
    %661 = vmatpush1.msra.mxu0 %v660
    %662 = vmatprep.subr.mxu0 0.0
    %v663 = vand.u32 %v49, 4294901760
    %664 = vmatpush1.msra.mxu0 %v663
    %665 = vmatprep.subr.mxu0 0.0
    %v666 = vand.u32 %v48, 4294901760
    %667 = vmatpush1.msra.mxu0 %v666
    %668 = vmatprep.subr.mxu0 0.0
    %v669 = vand.u32 %v47, 4294901760
    %670 = vmatpush1.msra.mxu0 %v669
    %671 = vmatprep.subr.mxu0 0.0
    %v672 = vand.u32 %v46, 4294901760
    %673 = vmatpush1.msra.mxu0 %v672
    %674 = vmatprep.subr.mxu0 0.0
    %v675 = vand.u32 %v45, 4294901760
    %676 = vmatpush1.msra.mxu0 %v675
    %677 = vmatprep.subr.mxu0 0.0
    %678 = vmatpush2.msra.mxu0 0.0
    %679 = vmatprep.subr.mxu0 0.0
    %680 = vmatpush2.msra.mxu0 0.0
    %681 = vmatprep.subr.mxu0 0.0
    %682 = vmatpush2.msra.mxu0 0.0
    %683 = vmatprep.subr.mxu0 0.0
    %684 = vmatpush2.msra.mxu0 0.0
    %685 = vmatprep.subr.mxu0 0.0
    %686 = vmatpush2.msra.mxu0 0.0
    %687 = vmatprep.subr.mxu0 0.0
    %688 = vmatpush2.msra.mxu0 0.0
    %689 = vmatprep.subr.mxu0 0.0
    %690 = vmatpush2.msra.mxu0 0.0
    %691 = vmatprep.subr.mxu0 0.0
    %692 = vmatpush2.msra.mxu0 0.0
    %693 = vmatprep.subr.mxu0 0.0
    %694 = vmatpush2.msra.mxu0 0.0
    %695 = vmatprep.subr.mxu0 0.0
    %696 = vmatpush2.msra.mxu0 0.0
    %697 = vmatprep.subr.mxu0 0.0
    %698 = vmatpush2.msra.mxu0 0.0
    %699 = vmatprep.subr.mxu0 0.0
    %700 = vmatpush2.msra.mxu0 0.0
    %701 = vmatprep.subr.mxu0 0.0
    %702 = vmatpush2.msra.mxu0 0.0
    %703 = vmatprep.subr.mxu0 0.0
    %704 = vmatpush2.msra.mxu0 0.0
    %705 = vmatprep.subr.mxu0 0.0
    %706 = vmatpush2.msra.mxu0 0.0
    %707 = vmatprep.subr.mxu0 0.0
    %708 = vmatpush2.msra.mxu0 0.0
    %709 = vmatprep.mubr.f32.mxu0 0.0
    %v710 = vand.u32 %v74, 4294901760
    %711 = vmatmul.mubr.f32.gmra.mxu0 %v710
    %v712 = vpop.f32.mrf.mxu0
    %v713 = vadd.f32 %v626, %v712
    %v714 = vpop.f32.mrf.mxu0
    %715 = vdwg.mxu0
    %vm716 = vcmask 523264
    %717 = vst.msk [vmem:[#allocation2] sm:$0xff] %vm716, %v713
    // Predicated region
    $region10: #{tpu_custom_call.1} parent=1 // pred_check
      _
    $region11: #{tpu_custom_call.1} parent=1 // pred_check_branch
      %719 = sbr.rel (0) target = $region13
    $region12: #{tpu_custom_call.1} parent=1 // pred_region
      %s721 = ssub.s32 128, 128
      %722 = vsyncadd [#allocation3], %s721
      %s724 = sshll.u32 [#allocation2], 4
      %s725 = int_to_ptr.vmem [resolvable:$true] %s724
      %727 = dma.vmem_to_hbm [thread:$0]  %s725, 128, %s2, [#allocation3]
    $region13: #{tpu_custom_call.1} parent=1 // pred_fallthru
      _
    // Predicated region
    $region14: #{tpu_custom_call.1} parent=1 // pred_check
      _
    $region15: #{tpu_custom_call.1} parent=1 // pred_check_branch
      %729 = sbr.rel (0) target = $region17
    $region16: #{tpu_custom_call.1} parent=1 // pred_region
      %730 = dma.done [#allocation3], 128
    $region17: #{tpu_custom_call.1} parent=1 // pred_fallthru
      _
    %731 = vsyncpa [#allocation3], 1

</llo_original>
